<compile_context>
chip_gen: v5e
topology: v5e:2x2
jax: 0.10.0
libtpu: 0.0.40
codegen_flags: <defaults>
</compile_context>

<pallas_src>
import math

import jax
import jax.numpy as jnp
from jax.experimental import pallas as pl
from jax.experimental.pallas import tpu as pltpu

# InvertibleNorm: log_scale = log(273.15); inverse(x) = x * exp(log_scale)
_LOG_SCALE = math.log(273.15)
_INV_SCALE = math.exp(_LOG_SCALE)


def _round_up(x, m):
    return ((x + m - 1) // m) * m


def _generator_norminv_kernel(dir_ref, ids_ref, w1t_ref, b1_ref, w2t_ref,
                              b2_ref, o_ref):
    """Fused embedding lookup + generator MLP + InvertibleNorm.inverse,
    feature-major layout (batch on the MXU lane axis).

    dir_ref : (F_dir, TB)        bf16   direct features (batch tile, transposed)
    ids_ref : (1, TB)            int32  station ids (lane-dense)
    w1t_ref : (H, F_dir+NS_pad)  bf16   [w1_dir ; emb @ w1_emb]^T
    b1_ref  : (H, 1)             f32
    w2t_ref : (2, H)             bf16   pre-scaled by exp(log(273.15))
    b2_ref  : (2, 1)             f32    pre-scaled by exp(log(273.15))
    o_ref   : (2, TB)            f32
    """
    dir_x = dir_ref[...]                                     # (Fd, TB) bf16
    ids = ids_ref[...]                                       # (1, TB)  int32
    f_dir, tb = dir_x.shape
    ns = w1t_ref.shape[1] - f_dir

    # Fused embedding "gather": one-hot row-select done on the MXU (exact),
    # with the batch on the lane axis and stations on the sublane axis.
    station_iota = jax.lax.broadcasted_iota(jnp.int32, (ns, tb), 0)
    one_hot = (ids == station_iota).astype(dir_x.dtype)      # (NS, TB) bf16

    # Single merged layer-1 matmul: M = H (tiny), K = F_dir + NS_pad, N = TB.
    x_full = jnp.concatenate([dir_x, one_hot], axis=0)       # (K, TB) bf16
    h = jnp.dot(w1t_ref[...], x_full,
                preferred_element_type=jnp.float32)          # (H, TB) f32
    h = jnp.maximum(h + b1_ref[...], 0.0)                    # f32 elementwise

    # Layer 2 with bf16 MXU operands (f32 x f32 would multi-pass); w2t/b2
    # already carry the InvertibleNorm.inverse scale.
    y = jnp.dot(w2t_ref[...], h.astype(w2t_ref.dtype),
                preferred_element_type=jnp.float32)          # (2, TB) f32
    o_ref[...] = y + b2_ref[...]


def prepare_kernel_params(params):
    """One-time prep: fold embedding into layer 1, merge the layer-1 weights,
    fold the norm scale into layer 2, transpose to feature-major, cast the
    MXU operands to bf16."""
    emb = params["embedding"].astype(jnp.float32)             # (NS, E)
    w1 = params["w1"].astype(jnp.float32)                     # (F_dir + E, H)
    num_stations, emb_dim = emb.shape
    f_dir = w1.shape[0] - emb_dim

    w1_dir = w1[:f_dir]                                       # (F_dir, H)
    w1_emb = w1[f_dir:]                                       # (E, H)
    w1_emb_folded = emb @ w1_emb                              # (NS, H)
    ns_pad = _round_up(num_stations, 16)                      # bf16 sublane pack
    w1_emb_folded = jnp.pad(w1_emb_folded,
                            ((0, ns_pad - num_stations), (0, 0)))

    w1_full_t = jnp.concatenate([w1_dir, w1_emb_folded], axis=0).T  # (H, K)

    return {
        "w1_full_t": w1_full_t.astype(jnp.bfloat16),                       # (H, K)
        "b1_t": params["b1"].astype(jnp.float32).reshape(-1, 1),           # (H, 1)
        "w2_t": (params["w2"] * _INV_SCALE).T.astype(jnp.bfloat16),        # (2, H)
        "b2_t": (params["b2"] * _INV_SCALE).reshape(-1, 1).astype(jnp.float32),  # (2, 1)
    }


def minmax_forward(dir_inputs, id_inputs, kparams, *, tile_b=4096):
    """MinMaxModel.forward equivalent.

    dir_inputs: (N, F_dir) float32
    id_inputs : (N,)       int32 station ids
    kparams   : output of prepare_kernel_params
    returns   : (N, 2)     float32
    """
    n, f_dir = dir_inputs.shape
    w1t = kparams["w1_full_t"]
    b1 = kparams["b1_t"]
    w2t = kparams["w2_t"]
    b2 = kparams["b2_t"]
    hidden, k_total = w1t.shape
    n_out = w2t.shape[0]

    # Lane-dense batch tile (multiple of 128); keep >=2 grid steps when N is
    # large enough so both v7x TensorCores get work. Per-tile VMEM footprint
    # after the layout fixes is tiny, so no vmem_limit override is needed.
    tb = max(128, min(tile_b, _round_up(pl.cdiv(n, 2), 128)))
    grid_n = pl.cdiv(n, tb)
    n_pad = grid_n * tb

    dir_x = dir_inputs.astype(jnp.bfloat16).T                 # (F_dir, N)
    ids = id_inputs.astype(jnp.int32).reshape(1, -1)          # (1, N) lane-dense
    if n_pad != n:
        dir_x = jnp.pad(dir_x, ((0, 0), (0, n_pad - n)))
        ids = jnp.pad(ids, ((0, 0), (0, n_pad - n)))

    cost = pl.CostEstimate(
        flops=2 * n_pad * (k_total * hidden + hidden * n_out),
        transcendentals=0,
        bytes_accessed=int(dir_x.size * 2 + ids.size * 4 + n_pad * n_out * 4
                           + w1t.size * 2 + b1.size * 4
                           + w2t.size * 2 + b2.size * 4),
    )

    out = pl.pallas_call(
        _generator_norminv_kernel,
        out_shape=jax.ShapeDtypeStruct((n_out, n_pad), jnp.float32),
        grid_spec=pltpu.PrefetchScalarGridSpec(
            num_scalar_prefetch=0,
            grid=(grid_n,),
            in_specs=[
                pl.BlockSpec((f_dir, tb), lambda i: (0, i)),       # dir (F, TB)
                pl.BlockSpec((1, tb), lambda i: (0, i)),           # ids (1, TB)
                pl.BlockSpec((hidden, k_total), lambda i: (0, 0)),  # w1^T merged
                pl.BlockSpec((hidden, 1), lambda i: (0, 0)),        # b1
                pl.BlockSpec((n_out, hidden), lambda i: (0, 0)),    # w2^T (scaled)
                pl.BlockSpec((n_out, 1), lambda i: (0, 0)),         # b2 (scaled)
            ],
            out_specs=pl.BlockSpec((n_out, tb), lambda i: (0, i)),  # lane-dense
        ),
        compiler_params=pltpu.CompilerParams(
            dimension_semantics=("parallel",)),
        cost_estimate=cost,
    )(dir_x, ids, w1t, b1, w2t, b2)

    return out[:, :n].T                                       # (N, 2)


def init_params(key, *, num_stations=10, f_dir=16, emb_dim=16, hidden=32):
    k_e, k_w1, k_b1, k_w2, k_b2 = jax.random.split(key, 5)
    f_in = f_dir + emb_dim
    return {
        "embedding": jax.random.normal(k_e, (num_stations, emb_dim), jnp.float32) * 0.1,
        "w1": jax.random.normal(k_w1, (f_in, hidden), jnp.float32) / math.sqrt(f_in),
        "b1": jax.random.normal(k_b1, (1, hidden), jnp.float32) * 0.01,
        "w2": jax.random.normal(k_w2, (hidden, 2), jnp.float32) / math.sqrt(hidden),
        "b2": jax.random.normal(k_b2, (1, 2), jnp.float32) * 0.01,
    }


def _reference(dir_inputs, id_inputs, params):
    x = jnp.concatenate([dir_inputs, params["embedding"][id_inputs]], axis=-1)
    h = jnp.maximum(x @ params["w1"] + params["b1"], 0.0)
    y = h @ params["w2"] + params["b2"]
    return y * _INV_SCALE


if __name__ == "__main__":
    key = jax.random.PRNGKey(0)
    k_p, k_dir, k_id = jax.random.split(key, 3)

    # Small demo shapes; N deliberately NOT a tile multiple to exercise the
    # cdiv + padding path.
    N, F_DIR, EMB_DIM, HIDDEN, N_STATIONS = 20, 16, 16, 32, 10
    params = init_params(k_p, num_stations=N_STATIONS, f_dir=F_DIR,
                         emb_dim=EMB_DIM, hidden=HIDDEN)
    kparams = prepare_kernel_params(params)

    dir_inputs = jax.random.normal(k_dir, (N, F_DIR), jnp.float32)
    id_inputs = jax.random.randint(k_id, (N,), 0, N_STATIONS, jnp.int32)

    out = minmax_forward(dir_inputs, id_inputs, kparams)
    out = jax.block_until_ready(out)

    ref = _reference(dir_inputs, id_inputs, params)
    assert out.shape == (N, 2)
    # bf16 MXU operands -> ~2^-8 relative error; outputs carry the 273.15
    # norm scale, so compare error relative to the output magnitude.
    err = float(jnp.max(jnp.abs(out - ref)))
    scale = float(jnp.max(jnp.abs(ref))) + 1.0
    assert err / scale < 2e-2, f"mismatch vs reference: err={err}, scale={scale}"
    print("KERNEL_OK")
</pallas_src>

<mosaic_0001>
module attributes {stable_mosaic.version = 11 : i64} {
  func.func @_generator_norminv_kernel(%arg0: i32, %arg1: memref<16x128xbf16, #tpu.memory_space<vmem>>, %arg2: memref<1x128xi32, #tpu.memory_space<vmem>>, %arg3: memref<32x32xbf16, #tpu.memory_space<vmem>>, %arg4: memref<32x1xf32, #tpu.memory_space<vmem>>, %arg5: memref<2x32xbf16, #tpu.memory_space<vmem>>, %arg6: memref<2x1xf32, #tpu.memory_space<vmem>>, %arg7: memref<2x128xf32, #tpu.memory_space<vmem>>) attributes {dimension_semantics = [#tpu.dimension_semantics<parallel>], iteration_bounds = array<i64: 1>, scalar_prefetch = 0 : i64, scratch_operands = 0 : i64, tpu.core_type = #tpu.core_type<tc>, window_params = [{transform_indices = @transform_0, window_bounds = array<i64: 16, 128>}, {transform_indices = @transform_1, window_bounds = array<i64: 1, 128>}, {pipeline_mode = #tpu.pipeline_mode<synchronous>, transform_indices = @transform_2, window_bounds = array<i64: 32, 32>}, {pipeline_mode = #tpu.pipeline_mode<synchronous>, transform_indices = @transform_3, window_bounds = array<i64: 32, 1>}, {pipeline_mode = #tpu.pipeline_mode<synchronous>, transform_indices = @transform_4, window_bounds = array<i64: 2, 32>}, {pipeline_mode = #tpu.pipeline_mode<synchronous>, transform_indices = @transform_5, window_bounds = array<i64: 2, 1>}, {transform_indices = @transform_6, window_bounds = array<i64: 2, 128>}]} {
    %c0 = arith.constant 0 : index
    %c0_0 = arith.constant 0 : index
    %0 = vector.load %arg1[%c0, %c0_0] : memref<16x128xbf16, #tpu.memory_space<vmem>>, vector<16x128xbf16>
    %c0_1 = arith.constant 0 : index
    %c0_2 = arith.constant 0 : index
    %1 = vector.load %arg2[%c0_1, %c0_2] : memref<1x128xi32, #tpu.memory_space<vmem>>, vector<1x128xi32>
    %2 = tpu.iota {dimensions = array<i32: 0>} : vector<16x128xi32>
    %3 = vector.broadcast %1 : vector<1x128xi32> to vector<16x128xi32>
    %4 = arith.cmpi eq, %3, %2 : vector<16x128xi32>
    %5 = arith.extui %4 : vector<16x128xi1> to vector<16x128xi32>
    %6 = arith.sitofp %5 : vector<16x128xi32> to vector<16x128xf32>
    %7 = arith.truncf %6 : vector<16x128xf32> to vector<16x128xbf16>
    %8 = tpu.concatenate %0, %7 in 0 : vector<16x128xbf16>, vector<16x128xbf16> -> vector<32x128xbf16>
    %c0_3 = arith.constant 0 : index
    %c0_4 = arith.constant 0 : index
    %9 = vector.load %arg3[%c0_3, %c0_4] : memref<32x32xbf16, #tpu.memory_space<vmem>>, vector<32x32xbf16>
    %cst = arith.constant dense<0.000000e+00> : vector<32x128xf32>
    %10 = tpu.matmul %9, %8, %cst {dimension_numbers = #tpu.dot_dimension_numbers<[1], [0], [0], [1], [0, 0, 1, 1], [], []>} : vector<32x32xbf16>, vector<32x128xbf16>, vector<32x128xf32> -> vector<32x128xf32>
    %c0_5 = arith.constant 0 : index
    %c0_6 = arith.constant 0 : index
    %11 = vector.load %arg4[%c0_5, %c0_6] : memref<32x1xf32, #tpu.memory_space<vmem>>, vector<32x1xf32>
    %12 = vector.broadcast %11 : vector<32x1xf32> to vector<32x128xf32>
    %13 = arith.addf %10, %12 : vector<32x128xf32>
    %cst_7 = arith.constant 0.000000e+00 : f32
    %14 = vector.broadcast %cst_7 : f32 to vector<32x128xf32>
    %15 = arith.maximumf %13, %14 : vector<32x128xf32>
    %c0_8 = arith.constant 0 : index
    %c0_9 = arith.constant 0 : index
    %16 = vector.load %arg5[%c0_8, %c0_9] : memref<2x32xbf16, #tpu.memory_space<vmem>>, vector<2x32xbf16>
    %17 = arith.truncf %15 : vector<32x128xf32> to vector<32x128xbf16>
    %cst_10 = arith.constant dense<0.000000e+00> : vector<2x128xf32>
    %18 = tpu.matmul %16, %17, %cst_10 {dimension_numbers = #tpu.dot_dimension_numbers<[1], [0], [0], [1], [0, 0, 1, 1], [], []>} : vector<2x32xbf16>, vector<32x128xbf16>, vector<2x128xf32> -> vector<2x128xf32>
    %c0_11 = arith.constant 0 : index
    %c0_12 = arith.constant 0 : index
    %19 = vector.load %arg6[%c0_11, %c0_12] : memref<2x1xf32, #tpu.memory_space<vmem>>, vector<2x1xf32>
    %20 = vector.broadcast %19 : vector<2x1xf32> to vector<2x128xf32>
    %21 = arith.addf %18, %20 : vector<2x128xf32>
    %c0_13 = arith.constant 0 : index
    %c0_14 = arith.constant 0 : index
    %22 = vector.load %arg7[%c0_13, %c0_14] : memref<2x128xf32, #tpu.memory_space<vmem>>, vector<2x128xf32>
    tpu.vector_store %arg7[%c0_13, %c0_14], %21 {strides = array<i32>} : memref<2x128xf32, #tpu.memory_space<vmem>>, vector<2x128xf32>,
    return
  }
  func.func @transform_0(%arg0: i32) -> (i32, i32) {
    %c0_i32 = arith.constant 0 : i32
    %c0_i32_0 = arith.constant 0 : i32
    return %c0_i32, %arg0 : i32, i32
  }
  func.func @transform_1(%arg0: i32) -> (i32, i32) {
    %c0_i32 = arith.constant 0 : i32
    %c0_i32_0 = arith.constant 0 : i32
    return %c0_i32, %arg0 : i32, i32
  }
  func.func @transform_2(%arg0: i32) -> (i32, i32) {
    %c0_i32 = arith.constant 0 : i32
    %c0_i32_0 = arith.constant 0 : i32
    %c0_i32_1 = arith.constant 0 : i32
    return %c0_i32, %c0_i32_0 : i32, i32
  }
  func.func @transform_3(%arg0: i32) -> (i32, i32) {
    %c0_i32 = arith.constant 0 : i32
    %c0_i32_0 = arith.constant 0 : i32
    %c0_i32_1 = arith.constant 0 : i32
    return %c0_i32, %c0_i32_0 : i32, i32
  }
  func.func @transform_4(%arg0: i32) -> (i32, i32) {
    %c0_i32 = arith.constant 0 : i32
    %c0_i32_0 = arith.constant 0 : i32
    %c0_i32_1 = arith.constant 0 : i32
    return %c0_i32, %c0_i32_0 : i32, i32
  }
  func.func @transform_5(%arg0: i32) -> (i32, i32) {
    %c0_i32 = arith.constant 0 : i32
    %c0_i32_0 = arith.constant 0 : i32
    %c0_i32_1 = arith.constant 0 : i32
    return %c0_i32, %c0_i32_0 : i32, i32
  }
  func.func @transform_6(%arg0: i32) -> (i32, i32) {
    %c0_i32 = arith.constant 0 : i32
    %c0_i32_0 = arith.constant 0 : i32
    return %c0_i32, %arg0 : i32, i32
  }
}

</mosaic_0001>

<llo_original>
// kernel: tpu_custom_call.1
$region0: #{tpu_custom_call.1}
  #allocation0 [shape = 'u32[]', space=smem, size = 0x4, offset = 0x4, fixed_abs, tag = 'smem constant byte address 0x4 - core index']
  #allocation1 [shape = 'u32[72,128]{1,0:T(1,128)}', space=vmem, size = 0x9000, scoped, tag = 'internal scratch']
  %s0 = inlined_call_operand.vmem [shape: bf16[16,128], index: 0, kind: input, shape index: {}]
  %s1 = inlined_call_operand.vmem [shape: s32[1,128], index: 1, kind: input, shape index: {}]
  %s2 = inlined_call_operand.vmem [shape: bf16[32,32], index: 2, kind: input, shape index: {}]
  %s3 = inlined_call_operand.vmem [shape: f32[32,1], index: 3, kind: input, shape index: {}]
  %s4 = inlined_call_operand.vmem [shape: bf16[2,32], index: 4, kind: input, shape index: {}]
  %s5 = inlined_call_operand.vmem [shape: f32[2,1], index: 5, kind: input, shape index: {}]
  %s6 = inlined_call_operand.hbm [shape: f32[2,128], index: 6, kind: output, shape index: {}]
  %s7 = sld [smem:[#allocation0]]
  $region34: #{tpu_custom_call.1} parent=0
    _
  %s9 = ssub.s32 1, %s7
  %s10 = scalar_select 0, %s9, %s7
  $region1: #{tpu_custom_call.1} parent=0
    #allocation2 [shape = 'u8[1024]{0}', space=vmem, size = 0x400, scoped, tag = 'output window, operand 0, single buffered']
    #allocation3 [shape = 's32[1]{0}', space=sflag, size = 0x4, scoped, tag = 'scoped memory for tpu_custom_call.1']
    %11 = vsyncpa [#allocation3], 0
    // Predicated region
    $region2: #{tpu_custom_call.1} parent=1 // pred_check
      _
    $region3: #{tpu_custom_call.1} parent=1 // pred_check_branch
      %13 = sbr.rel (0) target = $region5
    $region4: #{tpu_custom_call.1} parent=1 // pred_region
      _
    $region5: #{tpu_custom_call.1} parent=1 // pred_fallthru
      _
    // Predicated region
    $region6: #{tpu_custom_call.1} parent=1 // pred_check
      _
    $region7: #{tpu_custom_call.1} parent=1 // pred_check_branch
      %15 = sbr.rel (0) target = $region9
    $region8: #{tpu_custom_call.1} parent=1 // pred_region
      _
    $region9: #{tpu_custom_call.1} parent=1 // pred_fallthru
      _
    // Predicated region
    $region10: #{tpu_custom_call.1} parent=1 // pred_check
      _
    $region11: #{tpu_custom_call.1} parent=1 // pred_check_branch
      %17 = sbr.rel (0) target = $region13
    $region12: #{tpu_custom_call.1} parent=1 // pred_region
      _
    $region13: #{tpu_custom_call.1} parent=1 // pred_fallthru
      _
    // Predicated region
    $region14: #{tpu_custom_call.1} parent=1 // pred_check
      _
    $region15: #{tpu_custom_call.1} parent=1 // pred_check_branch
      %19 = sbr.rel (0) target = $region17
    $region16: #{tpu_custom_call.1} parent=1 // pred_region
      _
    $region17: #{tpu_custom_call.1} parent=1 // pred_fallthru
      _
    // Predicated region
    $region18: #{tpu_custom_call.1} parent=1 // pred_check
      _
    $region19: #{tpu_custom_call.1} parent=1 // pred_check_branch
      %21 = sbr.rel (0) target = $region21
    $region20: #{tpu_custom_call.1} parent=1 // pred_region
      _
    $region21: #{tpu_custom_call.1} parent=1 // pred_fallthru
      _
    // Predicated region
    $region22: #{tpu_custom_call.1} parent=1 // pred_check
      _
    $region23: #{tpu_custom_call.1} parent=1 // pred_check_branch
      %23 = sbr.rel (0) target = $region25
    $region24: #{tpu_custom_call.1} parent=1 // pred_region
      _
    $region25: #{tpu_custom_call.1} parent=1 // pred_fallthru
      _
    %v25 = vld [vmem:[%s0] sm:$0xf]
    %v26 = vld [vmem:[%s0 + $0x4] sm:$0xf]
    %v27 = vld [vmem:[%s1] sm:$0x1]
    %v28 = vlaneseq
    %v29 = vshrl.u32 %v28, 7
    %v30 = vadd.s32 %v29, 8
    %v31 = vperm.slane %v27, 0
    %vm32 = vcmp.eq.s32.totalorder %v31, %v29
    %vm33 = vcmp.eq.s32.totalorder %v31, %v30
    %v34 = vsel %vm32, 1, 0
    %v35 = vsel %vm33, 1, 0
    %v36 = vcvt.s32.f32 %v34
    %v37 = vcvt.s32.f32 %v35
    %v38 = vpack.c.bf16 %v36, %v36
    %v39 = vpack.c.bf16 %v37, %v37
    %v42 = vunpack.c.l.b16 %v25
    %v43 = vunpack.c.l.b16 %v26
    %v44 = vpack.c.b16 %v43, %v42
    %v48 = vunpack.c.l.b16 %v38
    %v49 = vunpack.c.l.b16 %v39
    %v50 = vpack.c.b16 %v49, %v48
    %v52 = vld [vmem:[%s2] sm:$0xf]
    %v53 = vld [vmem:[%s2 + $0x4] sm:$0xf]
    %v54 = vld [vmem:[%s2 + $0x8] sm:$0xf]
    %v55 = vld [vmem:[%s2 + $0xc] sm:$0xf]
    %v56 = vld [vmem:[%s3] sm:$0xff]
    %v57 = vld [vmem:[%s3 + $0x8] sm:$0xff]
    %v58 = vld [vmem:[%s3 + $0x10] sm:$0xff]
    %v59 = vld [vmem:[%s3 + $0x18] sm:$0xff]
    %61 = vset.pattern.permute.xlu0 0
    %62 = vperm.xlu0 %61, %v56
    %v63 = vpop.permute.xlu0 %62
    %66 = vset.pattern.permute.xlu0 0
    %67 = vperm.xlu0 %66, %v57
    %v68 = vpop.permute.xlu0 %67
    %71 = vset.pattern.permute.xlu0 0
    %72 = vperm.xlu0 %71, %v58
    %v73 = vpop.permute.xlu0 %72
    %76 = vset.pattern.permute.xlu0 0
    %77 = vperm.xlu0 %76, %v59
    %v78 = vpop.permute.xlu0 %77
    %v84 = vunpack.c.l.b16 %v52
    %v85 = vunpack.c.l.b16 %v53
    %v86 = vunpack.c.l.b16 %v54
    %v87 = vunpack.c.l.b16 %v55
    %v88 = vpack.c.b16 %v85, %v84
    %v89 = vpack.c.b16 %v87, %v86
    %vm90 = vcmask 261120
    %v92 = vsel %vm90, %v88, 0
    %v95 = vsel %vm90, %v89, 0
    %97 = vmatpush.bf16.msra.mxu0 0
    %98 = vmatpush.bf16.msra.mxu0 0
    %99 = vmatpush.bf16.msra.mxu0 0
    %100 = vmatpush.bf16.msra.mxu0 0
    %101 = vmatpush.bf16.msra.mxu0 0
    %102 = vmatpush.bf16.msra.mxu0 0
    %103 = vmatpush.bf16.msra.mxu0 %v50
    %104 = vmatpush.bf16.msra.mxu0 %v44
    %105 = vmatmul.bf16.gmra.mxu0 %v92
    %v106 = vpop.f32.mrf.mxu0
    %v107 = vadd.f32 %v63, %v106
    %v108 = vpop.f32.mrf.mxu0
    %v109 = vadd.f32 %v68, %v108
    %110 = vmatmul.bf16.gmra.mxu0 %v95
    %v111 = vpop.f32.mrf.mxu0
    %v112 = vadd.f32 %v73, %v111
    %v113 = vpop.f32.mrf.mxu0
    %v114 = vadd.f32 %v78, %v113
    %115 = vdwg.mxu0
    %v116 = vmax.f32 %v107, 0.0
    %v117 = vmax.f32 %v109, 0.0
    %v118 = vmax.f32 %v112, 0.0
    %v119 = vmax.f32 %v114, 0.0
    %v120 = vld [vmem:[%s4] sm:$0x1]
    %v121 = vpack.c.bf16 %v117, %v116
    %v122 = vpack.c.bf16 %v119, %v118
    %v123 = vld [vmem:[%s5] sm:$0x3]
    %125 = vset.pattern.permute.xlu0 0
    %126 = vperm.xlu0 %125, %v123
    %v127 = vpop.permute.xlu0 %126
    %v130 = vsel %vm90, %v120, 0
    %132 = vmatpush.bf16.msra.mxu0 0
    %133 = vmatpush.bf16.msra.mxu0 0
    %134 = vmatpush.bf16.msra.mxu0 0
    %135 = vmatpush.bf16.msra.mxu0 0
    %136 = vmatpush.bf16.msra.mxu0 0
    %137 = vmatpush.bf16.msra.mxu0 0
    %138 = vmatpush.bf16.msra.mxu0 %v122
    %139 = vmatpush.bf16.msra.mxu0 %v121
    %140 = vmatmul.bf16.gmra.mxu0 %v130
    %v141 = vpop.f32.mrf.mxu0
    %v142 = vadd.f32 %v127, %v141
    %v143 = vpop.f32.mrf.mxu0
    %144 = vdwg.mxu0
    %145 = vst [vmem:[#allocation2] sm:$0x3] %v142
    // Predicated region
    $region26: #{tpu_custom_call.1} parent=1 // pred_check
      _
    $region27: #{tpu_custom_call.1} parent=1 // pred_check_branch
      %147 = sbr.rel (0) target = $region29
    $region28: #{tpu_custom_call.1} parent=1 // pred_region
      %149 = vsyncadd [#allocation3], 0
      %s151 = sshll.u32 [#allocation2], 4
      %s152 = int_to_ptr.vmem [resolvable:$true] %s151
      %s153 = sshll.u32 %s6, 4
      %s154 = int_to_ptr.hbm [resolvable:$true] %s153
      %156 = dma.vmem_to_hbm [thread:$0]  %s152, 32, %s154, [#allocation3]
    $region29: #{tpu_custom_call.1} parent=1 // pred_fallthru
      _
    // Predicated region
    $region30: #{tpu_custom_call.1} parent=1 // pred_check
      _
    $region31: #{tpu_custom_call.1} parent=1 // pred_check_branch
      %158 = sbr.rel (0) target = $region33
    $region32: #{tpu_custom_call.1} parent=1 // pred_region
      %160 = dma.done [#allocation3], 32
    $region33: #{tpu_custom_call.1} parent=1 // pred_fallthru
      _
    %161 = vsyncpa [#allocation3], 1

</llo_original>
